<compile_context>
chip_gen: v7x
topology: tpu7x:2x2x1
jax: 0.10.0
libtpu: 0.0.40
codegen_flags: <defaults>
</compile_context>

<pallas_src>
import math

import jax
import jax.numpy as jnp
from jax.experimental import pallas as pl
from jax.experimental.pallas import tpu as pltpu


# ------------------------------- the kernel -------------------------------
def _make_prenet_kernel(num_layers):
    """Fused Prenet: (Linear -> ReLU -> dropout) x num_layers in one body."""

    def kernel(*refs):
        # refs = (x, w_0..w_{L-1}, mask_0..mask_{L-1}, out)
        x_ref = refs[0]
        w_refs = refs[1:1 + num_layers]
        m_refs = refs[1 + num_layers:1 + 2 * num_layers]
        out_ref = refs[1 + 2 * num_layers]

        h = x_ref[...]                                    # (R, K) f32
        for l in range(num_layers):
            # Bias-free Linear: bf16 operands, single MXU pass, f32 accumulate.
            h = jnp.dot(h.astype(jnp.bfloat16), w_refs[l][...],
                        preferred_element_type=jnp.float32)
            # ReLU.
            h = jnp.maximum(h, 0.0)
            # Dropout fused to one multiply: mask is {0, 1/(1-p)} f32.
            h = h * m_refs[l][...]
        out_ref[...] = h

    return kernel


# ------------------------------ host wrapper -------------------------------
def prenet_forward(x, weights, key, p=0.5):
    """Prenet forward pass.

    x:       (..., in_dim) float32
    weights: list of PyTorch-layout nn.Linear weights, each (out_dim, in_dim)
    key:     jax PRNG key for the dropout masks (dropout is always on)
    returns: (out, masks) with out shape (..., sizes[-1]); masks[l] is the
             (padded_rows, layer_dim) {0,1} keep-mask used for layer l.
    """
    lead = x.shape[:-1]
    rows = math.prod(lead)
    in_dim = x.shape[-1]
    num_layers = len(weights)
    layer_dims = [int(w.shape[0]) for w in weights]       # out dims
    out_dim = layer_dims[-1]

    # Lane-pad the input feature dim to a multiple of 128 (zero K-padding is
    # free on the MXU) and sublane-pad rows to a multiple of 8.
    in_pad = (-in_dim) % 128
    row_pad = (-rows) % 8
    R = rows + row_pad

    x2 = jnp.asarray(x, jnp.float32).reshape(rows, in_dim)
    if in_pad or row_pad:
        x2 = jnp.pad(x2, ((0, row_pad), (0, in_pad)))

    # Pre-transpose weights to (in, out), pad the first layer's K to match the
    # padded input, and pre-cast to bf16 on the host (single-pass MXU feed,
    # no in-kernel weight casts -- matters on v5e whose VPU has no bf16).
    wts = []
    for li, w in enumerate(weights):
        wt = jnp.asarray(w, jnp.float32).T                # (in, out)
        if li == 0 and in_pad:
            wt = jnp.pad(wt, ((0, in_pad), (0, 0)))
        wts.append(wt.astype(jnp.bfloat16))

    # Host-side dropout masks (deterministic for a fixed key), pre-scaled so
    # the kernel does a single multiply per element per layer.
    inv_keep = 1.0 / (1.0 - p)
    keys = jax.random.split(key, num_layers)
    masks = [jax.random.bernoulli(k, 1.0 - p, (R, d)).astype(jnp.float32)
             for k, d in zip(keys, layer_dims)]
    scaled_masks = [m * jnp.float32(inv_keep) for m in masks]

    n_inputs = 1 + 2 * num_layers
    vmem = pl.BlockSpec(memory_space=pltpu.MemorySpace.VMEM)

    out = pl.pallas_call(
        _make_prenet_kernel(num_layers),
        out_shape=jax.ShapeDtypeStruct((R, out_dim), jnp.float32),
        in_specs=[vmem] * n_inputs,
        out_specs=vmem,
    )(x2, *wts, *scaled_masks)

    out = out[:rows].reshape(lead + (out_dim,))
    return out, masks


# --------------------------- deterministic init ----------------------------
def xavier_uniform(key, out_dim, in_dim, gain=1.0):
    # nn.init.xavier_uniform_ for nn.Linear(in_dim, out_dim), gain('linear')=1.
    bound = gain * math.sqrt(6.0 / (in_dim + out_dim))
    return jax.random.uniform(key, (out_dim, in_dim), jnp.float32, -bound, bound)


# -------------------------------- reference --------------------------------
def prenet_ref(x, weights, masks, p=0.5):
    """Plain-JAX Prenet using the same masks and same bf16 matmul operands."""
    lead = x.shape[:-1]
    rows = math.prod(lead)
    h = jnp.asarray(x, jnp.float32).reshape(rows, x.shape[-1])
    scale = 1.0 / (1.0 - p)
    for w, m in zip(weights, masks):
        wt = jnp.asarray(w, jnp.float32).T.astype(jnp.bfloat16)
        h = jnp.dot(h.astype(jnp.bfloat16), wt,
                    preferred_element_type=jnp.float32)
        h = jnp.maximum(h, 0.0)
        h = h * m[:rows] * scale
    return h.reshape(lead + (h.shape[-1],))


if __name__ == "__main__":
    B, T = 2, 16
    IN_DIM = 64
    SIZES = [128, 128]          # lane-dense hidden dims (multiples of 128)
    P_DROP = 0.5

    key = jax.random.PRNGKey(0)
    k_x, k_drop, *k_ws = jax.random.split(key, 2 + len(SIZES))

    x = jax.random.normal(k_x, (B, T, IN_DIM), jnp.float32)
    in_sizes = [IN_DIM] + SIZES[:-1]
    weights = [xavier_uniform(k, o, i)
               for k, i, o in zip(k_ws, in_sizes, SIZES)]

    out, masks = prenet_forward(x, weights, k_drop, p=P_DROP)
    out = jax.block_until_ready(out)
    assert out.shape == (B, T, SIZES[-1])

    # Exact-path check: replay the same dropout masks on the host.
    ref = prenet_ref(x, weights, masks, p=P_DROP)
    max_err = float(jnp.max(jnp.abs(out - ref)))
    assert jnp.allclose(out, ref, atol=1e-2, rtol=1e-2), max_err

    # Dropout sanity: masks are {0,1} with keep-rate ~ (1 - p).
    for m in masks:
        assert bool(jnp.all((m == 0.0) | (m == 1.0)))
        assert 0.35 < float(m.mean()) < 0.65
    # Dropped positions are exactly zero in the output.
    last_mask = masks[-1][:B * T].reshape(out.shape)
    assert bool(jnp.all(jnp.where(last_mask == 0.0, out == 0.0, True)))

    # Deterministic for a fixed key.
    out2, _ = prenet_forward(x, weights, k_drop, p=P_DROP)
    out2 = jax.block_until_ready(out2)
    assert bool(jnp.all(out == out2))

    print("KERNEL_OK")
</pallas_src>

<mosaic_0001>
module attributes {stable_mosaic.version = 11 : i64} {
  func.func @kernel(%arg0: memref<32x128xf32, #tpu.memory_space<vmem>>, %arg1: memref<128x128xbf16, #tpu.memory_space<vmem>>, %arg2: memref<128x128xbf16, #tpu.memory_space<vmem>>, %arg3: memref<32x128xf32, #tpu.memory_space<vmem>>, %arg4: memref<32x128xf32, #tpu.memory_space<vmem>>, %arg5: memref<32x128xf32, #tpu.memory_space<vmem>>) attributes {dimension_semantics = [], scalar_prefetch = 0 : i64, scratch_operands = 0 : i64, tpu.core_type = #tpu.core_type<tc>} {
    %c0 = arith.constant 0 : index
    %c0_0 = arith.constant 0 : index
    %0 = vector.load %arg0[%c0, %c0_0] : memref<32x128xf32, #tpu.memory_space<vmem>>, vector<32x128xf32>
    %1 = arith.truncf %0 : vector<32x128xf32> to vector<32x128xbf16>
    %c0_1 = arith.constant 0 : index
    %c0_2 = arith.constant 0 : index
    %2 = vector.load %arg1[%c0_1, %c0_2] : memref<128x128xbf16, #tpu.memory_space<vmem>>, vector<128x128xbf16>
    %cst = arith.constant dense<0.000000e+00> : vector<32x128xf32>
    %3 = tpu.matmul %1, %2, %cst {dimension_numbers = #tpu.dot_dimension_numbers<[1], [0], [0], [1], [0, 0, 1, 1], [], []>} : vector<32x128xbf16>, vector<128x128xbf16>, vector<32x128xf32> -> vector<32x128xf32>
    %cst_3 = arith.constant 0.000000e+00 : f32
    %4 = vector.broadcast %cst_3 : f32 to vector<32x128xf32>
    %5 = arith.maximumf %3, %4 : vector<32x128xf32>
    %c0_4 = arith.constant 0 : index
    %c0_5 = arith.constant 0 : index
    %6 = vector.load %arg3[%c0_4, %c0_5] : memref<32x128xf32, #tpu.memory_space<vmem>>, vector<32x128xf32>
    %7 = arith.mulf %5, %6 : vector<32x128xf32>
    %8 = arith.truncf %7 : vector<32x128xf32> to vector<32x128xbf16>
    %c0_6 = arith.constant 0 : index
    %c0_7 = arith.constant 0 : index
    %9 = vector.load %arg2[%c0_6, %c0_7] : memref<128x128xbf16, #tpu.memory_space<vmem>>, vector<128x128xbf16>
    %cst_8 = arith.constant dense<0.000000e+00> : vector<32x128xf32>
    %10 = tpu.matmul %8, %9, %cst_8 {dimension_numbers = #tpu.dot_dimension_numbers<[1], [0], [0], [1], [0, 0, 1, 1], [], []>} : vector<32x128xbf16>, vector<128x128xbf16>, vector<32x128xf32> -> vector<32x128xf32>
    %cst_9 = arith.constant 0.000000e+00 : f32
    %11 = vector.broadcast %cst_9 : f32 to vector<32x128xf32>
    %12 = arith.maximumf %10, %11 : vector<32x128xf32>
    %c0_10 = arith.constant 0 : index
    %c0_11 = arith.constant 0 : index
    %13 = vector.load %arg4[%c0_10, %c0_11] : memref<32x128xf32, #tpu.memory_space<vmem>>, vector<32x128xf32>
    %14 = arith.mulf %12, %13 : vector<32x128xf32>
    %c0_12 = arith.constant 0 : index
    %c0_13 = arith.constant 0 : index
    %15 = vector.load %arg5[%c0_12, %c0_13] : memref<32x128xf32, #tpu.memory_space<vmem>>, vector<32x128xf32>
    tpu.vector_store %arg5[%c0_12, %c0_13], %14 {strides = array<i32>} : memref<32x128xf32, #tpu.memory_space<vmem>>, vector<32x128xf32>,
    return
  }
}

</mosaic_0001>

<llo_original>
// kernel: tpu_custom_call.1
$region0: #{tpu_custom_call.1}
  #allocation0 [shape = 'u32[]', space=smem, size = 0x4, offset = 0x4, fixed_abs, tag = 'smem constant byte address 0x4 - core index']
  #allocation1 [shape = 'u32[144,128]{1,0:T(1,128)}', space=vmem, size = 0x12000, scoped, tag = 'internal scratch']
  %s0 = inlined_call_operand.hbm [shape: f32[32,128], index: 0, kind: input, shape index: {}]
  %s1 = inlined_call_operand.hbm [shape: bf16[128,128], index: 1, kind: input, shape index: {}]
  %s2 = inlined_call_operand.hbm [shape: bf16[128,128], index: 2, kind: input, shape index: {}]
  %s3 = inlined_call_operand.hbm [shape: f32[32,128], index: 3, kind: input, shape index: {}]
  %s4 = inlined_call_operand.hbm [shape: f32[32,128], index: 4, kind: input, shape index: {}]
  %s5 = inlined_call_operand.hbm [shape: f32[32,128], index: 5, kind: output, shape index: {}]
  %s6 = sld [smem:[#allocation0]]
  $region50: #{tpu_custom_call.1} parent=0
    _
  %s8 = ssub.s32 1, %s6
  %s9 = scalar_select 0, %s8, %s6
  $region1: #{tpu_custom_call.1} parent=0
    #allocation2 [shape = 'u8[16384]{0}', space=vmem, size = 0x4000, scoped, tag = 'input window, operand 0, single buffered']
    #allocation3 [shape = 's32[1]{0}', space=sflag, size = 0x4, scoped, tag = 'scoped memory for tpu_custom_call.1']
    #allocation4 [shape = 's32[1]{0}', space=sflag, size = 0x4, scoped, tag = 'scoped memory for tpu_custom_call.1']
    #allocation5 [shape = 'u8[32768]{0}', space=vmem, size = 0x8000, scoped, tag = 'input window, operand 1, single buffered']
    #allocation6 [shape = 's32[1]{0}', space=sflag, size = 0x4, scoped, tag = 'scoped memory for tpu_custom_call.1']
    #allocation7 [shape = 'u8[32768]{0}', space=vmem, size = 0x8000, scoped, tag = 'input window, operand 2, single buffered']
    #allocation8 [shape = 'u8[16384]{0}', space=vmem, size = 0x4000, scoped, tag = 'input window, operand 3, single buffered']
    #allocation9 [shape = 's32[1]{0}', space=sflag, size = 0x4, scoped, tag = 'scoped memory for tpu_custom_call.1']
    #allocation10 [shape = 'u8[16384]{0}', space=vmem, size = 0x4000, scoped, tag = 'input window, operand 4, single buffered']
    #allocation11 [shape = 'u8[16384]{0}', space=vmem, size = 0x4000, scoped, tag = 'output window, operand 0, single buffered']
    %10 = vsyncpa [#allocation3], 0
    %11 = vsyncpa [#allocation6], 0
    %12 = vsyncpa [#allocation9], 0
    %13 = vsyncpa [#allocation4], 0
    // Predicated region
    $region2: #{tpu_custom_call.1} parent=1 // pred_check
      _
    $region3: #{tpu_custom_call.1} parent=1 // pred_check_branch
      %15 = sbr.rel (0) target = $region5
    $region4: #{tpu_custom_call.1} parent=1 // pred_region
      %s17 = ssub.s32 512, 512
      %18 = vsyncadd [#allocation3], %s17
      %s19 = sshll.u32 [#allocation2], 4
      %s20 = int_to_ptr.vmem [resolvable:$true] %s19
      %25 = dma.hbm_to_vmem [thread:$0]  %s0, 512, %s20, [#allocation3], 128, 128, 8
    $region5: #{tpu_custom_call.1} parent=1 // pred_fallthru
      _
    // Predicated region
    $region6: #{tpu_custom_call.1} parent=1 // pred_check
      _
    $region7: #{tpu_custom_call.1} parent=1 // pred_check_branch
      %27 = sbr.rel (0) target = $region9
    $region8: #{tpu_custom_call.1} parent=1 // pred_region
      %s29 = ssub.s32 1024, 1024
      %30 = vsyncadd [#allocation6], %s29
      %s31 = sshll.u32 [#allocation5], 4
      %s32 = int_to_ptr.vmem [resolvable:$true] %s31
      %37 = dma.hbm_to_vmem [thread:$0]  %s1, 1024, %s32, [#allocation6], 64, 64, 4
    $region9: #{tpu_custom_call.1} parent=1 // pred_fallthru
      _
    // Predicated region
    $region10: #{tpu_custom_call.1} parent=1 // pred_check
      _
    $region11: #{tpu_custom_call.1} parent=1 // pred_check_branch
      %39 = sbr.rel (0) target = $region13
    $region12: #{tpu_custom_call.1} parent=1 // pred_region
      %s41 = ssub.s32 1024, 1024
      %42 = vsyncadd [#allocation6], %s41
      %s43 = sshll.u32 [#allocation7], 4
      %s44 = int_to_ptr.vmem [resolvable:$true] %s43
      %49 = dma.hbm_to_vmem [thread:$0]  %s2, 1024, %s44, [#allocation6], 64, 64, 4
    $region13: #{tpu_custom_call.1} parent=1 // pred_fallthru
      _
    // Predicated region
    $region14: #{tpu_custom_call.1} parent=1 // pred_check
      _
    $region15: #{tpu_custom_call.1} parent=1 // pred_check_branch
      %51 = sbr.rel (0) target = $region17
    $region16: #{tpu_custom_call.1} parent=1 // pred_region
      %s53 = ssub.s32 512, 512
      %54 = vsyncadd [#allocation9], %s53
      %s55 = sshll.u32 [#allocation8], 4
      %s56 = int_to_ptr.vmem [resolvable:$true] %s55
      %61 = dma.hbm_to_vmem [thread:$0]  %s3, 512, %s56, [#allocation9], 128, 128, 8
    $region17: #{tpu_custom_call.1} parent=1 // pred_fallthru
      _
    // Predicated region
    $region18: #{tpu_custom_call.1} parent=1 // pred_check
      _
    $region19: #{tpu_custom_call.1} parent=1 // pred_check_branch
      %63 = sbr.rel (0) target = $region21
    $region20: #{tpu_custom_call.1} parent=1 // pred_region
      %s65 = ssub.s32 512, 512
      %66 = vsyncadd [#allocation9], %s65
      %s67 = sshll.u32 [#allocation10], 4
      %s68 = int_to_ptr.vmem [resolvable:$true] %s67
      %73 = dma.hbm_to_vmem [thread:$0]  %s4, 512, %s68, [#allocation9], 128, 128, 8
    $region21: #{tpu_custom_call.1} parent=1 // pred_fallthru
      _
    // Predicated region
    $region22: #{tpu_custom_call.1} parent=1 // pred_check
      _
    $region23: #{tpu_custom_call.1} parent=1 // pred_check_branch
      %75 = sbr.rel (0) target = $region25
    $region24: #{tpu_custom_call.1} parent=1 // pred_region
      %76 = dma.done [#allocation3], 512
    $region25: #{tpu_custom_call.1} parent=1 // pred_fallthru
      _
    // Predicated region
    $region26: #{tpu_custom_call.1} parent=1 // pred_check
      _
    $region27: #{tpu_custom_call.1} parent=1 // pred_check_branch
      %78 = sbr.rel (0) target = $region29
    $region28: #{tpu_custom_call.1} parent=1 // pred_region
      %79 = dma.done [#allocation6], 1024
    $region29: #{tpu_custom_call.1} parent=1 // pred_fallthru
      _
    // Predicated region
    $region30: #{tpu_custom_call.1} parent=1 // pred_check
      _
    $region31: #{tpu_custom_call.1} parent=1 // pred_check_branch
      %81 = sbr.rel (0) target = $region33
    $region32: #{tpu_custom_call.1} parent=1 // pred_region
      %82 = dma.done [#allocation6], 1024
    $region33: #{tpu_custom_call.1} parent=1 // pred_fallthru
      _
    // Predicated region
    $region34: #{tpu_custom_call.1} parent=1 // pred_check
      _
    $region35: #{tpu_custom_call.1} parent=1 // pred_check_branch
      %84 = sbr.rel (0) target = $region37
    $region36: #{tpu_custom_call.1} parent=1 // pred_region
      %85 = dma.done [#allocation9], 512
    $region37: #{tpu_custom_call.1} parent=1 // pred_fallthru
      _
    // Predicated region
    $region38: #{tpu_custom_call.1} parent=1 // pred_check
      _
    $region39: #{tpu_custom_call.1} parent=1 // pred_check_branch
      %87 = sbr.rel (0) target = $region41
    $region40: #{tpu_custom_call.1} parent=1 // pred_region
      %88 = dma.done [#allocation9], 512
    $region41: #{tpu_custom_call.1} parent=1 // pred_fallthru
      _
    %v90 = vld [vmem:[#allocation2] sm:$0xff]
    %v91 = vld [vmem:[#allocation2 + $0x8] sm:$0xff]
    %v92 = vld [vmem:[#allocation2 + $0x10] sm:$0xff]
    %v93 = vld [vmem:[#allocation2 + $0x18] sm:$0xff]
    %v94 = vpack.c.bf16 %v91, %v90
    %v95 = vpack.c.bf16 %v93, %v92
    %v96 = vld [vmem:[#allocation5] sm:$0xf]
    %v97 = vld [vmem:[#allocation5 + $0x4] sm:$0xf]
    %v98 = vld [vmem:[#allocation5 + $0x8] sm:$0xf]
    %v99 = vld [vmem:[#allocation5 + $0xc] sm:$0xf]
    %v100 = vld [vmem:[#allocation5 + $0x10] sm:$0xf]
    %v101 = vld [vmem:[#allocation5 + $0x14] sm:$0xf]
    %v102 = vld [vmem:[#allocation5 + $0x18] sm:$0xf]
    %v103 = vld [vmem:[#allocation5 + $0x1c] sm:$0xf]
    %v104 = vld [vmem:[#allocation5 + $0x20] sm:$0xf]
    %v105 = vld [vmem:[#allocation5 + $0x24] sm:$0xf]
    %v106 = vld [vmem:[#allocation5 + $0x28] sm:$0xf]
    %v107 = vld [vmem:[#allocation5 + $0x2c] sm:$0xf]
    %v108 = vld [vmem:[#allocation5 + $0x30] sm:$0xf]
    %v109 = vld [vmem:[#allocation5 + $0x34] sm:$0xf]
    %v110 = vld [vmem:[#allocation5 + $0x38] sm:$0xf]
    %v111 = vld [vmem:[#allocation5 + $0x3c] sm:$0xf]
    %v128 = vunpack.c.l.b16 %v96
    %v129 = vunpack.c.l.b16 %v97
    %v130 = vunpack.c.l.b16 %v98
    %v131 = vunpack.c.l.b16 %v99
    %v132 = vunpack.c.l.b16 %v100
    %v133 = vunpack.c.l.b16 %v101
    %v134 = vunpack.c.l.b16 %v102
    %v135 = vunpack.c.l.b16 %v103
    %v136 = vunpack.c.l.b16 %v104
    %v137 = vunpack.c.l.b16 %v105
    %v138 = vunpack.c.l.b16 %v106
    %v139 = vunpack.c.l.b16 %v107
    %v140 = vunpack.c.l.b16 %v108
    %v141 = vunpack.c.l.b16 %v109
    %v142 = vunpack.c.l.b16 %v110
    %v143 = vunpack.c.l.b16 %v111
    %v144 = vpack.c.b16 %v129, %v128
    %v145 = vpack.c.b16 %v131, %v130
    %v146 = vpack.c.b16 %v133, %v132
    %v147 = vpack.c.b16 %v135, %v134
    %v148 = vpack.c.b16 %v137, %v136
    %v149 = vpack.c.b16 %v139, %v138
    %v150 = vpack.c.b16 %v141, %v140
    %v151 = vpack.c.b16 %v143, %v142
    %160 = vmatprep.subr.bf16.mxu0 0
    %161 = vmatpush1.bf16.msra.mxu0 %v144
    %162 = vmatprep.subr.bf16.mxu0 0
    %163 = vmatpush1.bf16.msra.mxu0 %v145
    %164 = vmatprep.subr.bf16.mxu0 0
    %165 = vmatpush1.bf16.msra.mxu0 %v146
    %166 = vmatprep.subr.bf16.mxu0 0
    %167 = vmatpush1.bf16.msra.mxu0 %v147
    %168 = vmatprep.subr.bf16.mxu0 0
    %169 = vmatpush1.bf16.msra.mxu0 %v148
    %170 = vmatprep.subr.bf16.mxu0 0
    %171 = vmatpush1.bf16.msra.mxu0 %v149
    %172 = vmatprep.subr.bf16.mxu0 0
    %173 = vmatpush1.bf16.msra.mxu0 %v150
    %174 = vmatprep.subr.bf16.mxu0 0
    %175 = vmatpush1.bf16.msra.mxu0 %v151
    %176 = vmatprep.subr.bf16.mxu0 0
    %177 = vmatpush1.bf16.msra.mxu0 0
    %178 = vmatprep.subr.bf16.mxu0 0
    %179 = vmatpush1.bf16.msra.mxu0 0
    %180 = vmatprep.subr.bf16.mxu0 0
    %181 = vmatpush1.bf16.msra.mxu0 0
    %182 = vmatprep.subr.bf16.mxu0 0
    %183 = vmatpush1.bf16.msra.mxu0 0
    %184 = vmatprep.subr.bf16.mxu0 0
    %185 = vmatpush1.bf16.msra.mxu0 0
    %186 = vmatprep.subr.bf16.mxu0 0
    %187 = vmatpush1.bf16.msra.mxu0 0
    %188 = vmatprep.subr.bf16.mxu0 0
    %189 = vmatpush1.bf16.msra.mxu0 0
    %190 = vmatprep.subr.bf16.mxu0 0
    %191 = vmatpush1.bf16.msra.mxu0 0
    %192 = vmatprep.mubr.bf16.mxu0 0
    %193 = vmatmul.mubr.bf16.gmra.mrb[0].mxu0 %v94
    %v194 = vpop.f32.mrb[0].mxu0
    %v195 = vadd.f32 0.0, %v194
    %v196 = vpop.f32.mrb[0].mxu0
    %v197 = vpop.f32.mrb[0].mxu0
    %v198 = vadd.f32 0.0, %v197
    %v199 = vpop.f32.mrb[0].mxu0
    %200 = vmatprep.mubr.bf16.mxu0 0
    %201 = vmatmul.mubr.bf16.gmra.mrb[0].mxu0 %v95
    %v202 = vpop.f32.mrb[0].mxu0
    %v203 = vadd.f32 0.0, %v202
    %v204 = vpop.f32.mrb[0].mxu0
    %v205 = vpop.f32.mrb[0].mxu0
    %v206 = vadd.f32 0.0, %v205
    %v207 = vpop.f32.mrb[0].mxu0
    %208 = vdwg.mxu0
    %v209 = vmax.f32 %v195, 0.0
    %v210 = vmax.f32 %v198, 0.0
    %v211 = vmax.f32 %v203, 0.0
    %v212 = vmax.f32 %v206, 0.0
    %v213 = vld [vmem:[#allocation8] sm:$0xff]
    %v214 = vld [vmem:[#allocation8 + $0x8] sm:$0xff]
    %v215 = vld [vmem:[#allocation8 + $0x10] sm:$0xff]
    %v216 = vld [vmem:[#allocation8 + $0x18] sm:$0xff]
    %v217 = vmul.f32 %v209, %v213
    %v218 = vmul.f32 %v210, %v214
    %v219 = vmul.f32 %v211, %v215
    %v220 = vmul.f32 %v212, %v216
    %v221 = vpack.c.bf16 %v218, %v217
    %v222 = vpack.c.bf16 %v220, %v219
    %v223 = vld [vmem:[#allocation7] sm:$0xf]
    %v224 = vld [vmem:[#allocation7 + $0x4] sm:$0xf]
    %v225 = vld [vmem:[#allocation7 + $0x8] sm:$0xf]
    %v226 = vld [vmem:[#allocation7 + $0xc] sm:$0xf]
    %v227 = vld [vmem:[#allocation7 + $0x10] sm:$0xf]
    %v228 = vld [vmem:[#allocation7 + $0x14] sm:$0xf]
    %v229 = vld [vmem:[#allocation7 + $0x18] sm:$0xf]
    %v230 = vld [vmem:[#allocation7 + $0x1c] sm:$0xf]
    %v231 = vld [vmem:[#allocation7 + $0x20] sm:$0xf]
    %v232 = vld [vmem:[#allocation7 + $0x24] sm:$0xf]
    %v233 = vld [vmem:[#allocation7 + $0x28] sm:$0xf]
    %v234 = vld [vmem:[#allocation7 + $0x2c] sm:$0xf]
    %v235 = vld [vmem:[#allocation7 + $0x30] sm:$0xf]
    %v236 = vld [vmem:[#allocation7 + $0x34] sm:$0xf]
    %v237 = vld [vmem:[#allocation7 + $0x38] sm:$0xf]
    %v238 = vld [vmem:[#allocation7 + $0x3c] sm:$0xf]
    %v255 = vunpack.c.l.b16 %v223
    %v256 = vunpack.c.l.b16 %v224
    %v257 = vunpack.c.l.b16 %v225
    %v258 = vunpack.c.l.b16 %v226
    %v259 = vunpack.c.l.b16 %v227
    %v260 = vunpack.c.l.b16 %v228
    %v261 = vunpack.c.l.b16 %v229
    %v262 = vunpack.c.l.b16 %v230
    %v263 = vunpack.c.l.b16 %v231
    %v264 = vunpack.c.l.b16 %v232
    %v265 = vunpack.c.l.b16 %v233
    %v266 = vunpack.c.l.b16 %v234
    %v267 = vunpack.c.l.b16 %v235
    %v268 = vunpack.c.l.b16 %v236
    %v269 = vunpack.c.l.b16 %v237
    %v270 = vunpack.c.l.b16 %v238
    %v271 = vpack.c.b16 %v256, %v255
    %v272 = vpack.c.b16 %v258, %v257
    %v273 = vpack.c.b16 %v260, %v259
    %v274 = vpack.c.b16 %v262, %v261
    %v275 = vpack.c.b16 %v264, %v263
    %v276 = vpack.c.b16 %v266, %v265
    %v277 = vpack.c.b16 %v268, %v267
    %v278 = vpack.c.b16 %v270, %v269
    %287 = vmatprep.subr.bf16.mxu0 0
    %288 = vmatpush1.bf16.msra.mxu0 %v271
    %289 = vmatprep.subr.bf16.mxu0 0
    %290 = vmatpush1.bf16.msra.mxu0 %v272
    %291 = vmatprep.subr.bf16.mxu0 0
    %292 = vmatpush1.bf16.msra.mxu0 %v273
    %293 = vmatprep.subr.bf16.mxu0 0
    %294 = vmatpush1.bf16.msra.mxu0 %v274
    %295 = vmatprep.subr.bf16.mxu0 0
    %296 = vmatpush1.bf16.msra.mxu0 %v275
    %297 = vmatprep.subr.bf16.mxu0 0
    %298 = vmatpush1.bf16.msra.mxu0 %v276
    %299 = vmatprep.subr.bf16.mxu0 0
    %300 = vmatpush1.bf16.msra.mxu0 %v277
    %301 = vmatprep.subr.bf16.mxu0 0
    %302 = vmatpush1.bf16.msra.mxu0 %v278
    %303 = vmatprep.subr.bf16.mxu0 0
    %304 = vmatpush1.bf16.msra.mxu0 0
    %305 = vmatprep.subr.bf16.mxu0 0
    %306 = vmatpush1.bf16.msra.mxu0 0
    %307 = vmatprep.subr.bf16.mxu0 0
    %308 = vmatpush1.bf16.msra.mxu0 0
    %309 = vmatprep.subr.bf16.mxu0 0
    %310 = vmatpush1.bf16.msra.mxu0 0
    %311 = vmatprep.subr.bf16.mxu0 0
    %312 = vmatpush1.bf16.msra.mxu0 0
    %313 = vmatprep.subr.bf16.mxu0 0
    %314 = vmatpush1.bf16.msra.mxu0 0
    %315 = vmatprep.subr.bf16.mxu0 0
    %316 = vmatpush1.bf16.msra.mxu0 0
    %317 = vmatprep.subr.bf16.mxu0 0
    %318 = vmatpush1.bf16.msra.mxu0 0
    %319 = vmatprep.mubr.bf16.mxu0 0
    %320 = vmatmul.mubr.bf16.gmra.mrb[0].mxu0 %v221
    %v321 = vpop.f32.mrb[0].mxu0
    %v322 = vadd.f32 0.0, %v321
    %v323 = vpop.f32.mrb[0].mxu0
    %v324 = vpop.f32.mrb[0].mxu0
    %v325 = vadd.f32 0.0, %v324
    %v326 = vpop.f32.mrb[0].mxu0
    %327 = vmatprep.mubr.bf16.mxu0 0
    %328 = vmatmul.mubr.bf16.gmra.mrb[0].mxu0 %v222
    %v329 = vpop.f32.mrb[0].mxu0
    %v330 = vadd.f32 0.0, %v329
    %v331 = vpop.f32.mrb[0].mxu0
    %v332 = vpop.f32.mrb[0].mxu0
    %v333 = vadd.f32 0.0, %v332
    %v334 = vpop.f32.mrb[0].mxu0
    %335 = vdwg.mxu0
    %v336 = vmax.f32 %v322, 0.0
    %v337 = vmax.f32 %v325, 0.0
    %v338 = vmax.f32 %v330, 0.0
    %v339 = vmax.f32 %v333, 0.0
    %v340 = vld [vmem:[#allocation10] sm:$0xff]
    %v341 = vld [vmem:[#allocation10 + $0x8] sm:$0xff]
    %v342 = vld [vmem:[#allocation10 + $0x10] sm:$0xff]
    %v343 = vld [vmem:[#allocation10 + $0x18] sm:$0xff]
    %v344 = vmul.f32 %v336, %v340
    %v345 = vmul.f32 %v337, %v341
    %v346 = vmul.f32 %v338, %v342
    %v347 = vmul.f32 %v339, %v343
    %348 = vst [vmem:[#allocation11] sm:$0xff] %v344
    %349 = vst [vmem:[#allocation11 + $0x8] sm:$0xff] %v345
    %350 = vst [vmem:[#allocation11 + $0x10] sm:$0xff] %v346
    %351 = vst [vmem:[#allocation11 + $0x18] sm:$0xff] %v347
    // Predicated region
    $region42: #{tpu_custom_call.1} parent=1 // pred_check
      _
    $region43: #{tpu_custom_call.1} parent=1 // pred_check_branch
      %353 = sbr.rel (0) target = $region45
    $region44: #{tpu_custom_call.1} parent=1 // pred_region
      %s355 = ssub.s32 512, 512
      %356 = vsyncadd [#allocation4], %s355
      %s357 = sshll.u32 [#allocation11], 4
      %s358 = int_to_ptr.vmem [resolvable:$true] %s357
      %363 = dma.vmem_to_hbm [thread:$0]  %s358, 512, %s5, [#allocation4], 128, 128, 8
    $region45: #{tpu_custom_call.1} parent=1 // pred_fallthru
      _
    // Predicated region
    $region46: #{tpu_custom_call.1} parent=1 // pred_check
      _
    $region47: #{tpu_custom_call.1} parent=1 // pred_check_branch
      %365 = sbr.rel (0) target = $region49
    $region48: #{tpu_custom_call.1} parent=1 // pred_region
      %366 = dma.done [#allocation4], 512
    $region49: #{tpu_custom_call.1} parent=1 // pred_fallthru
      _
    %367 = vsyncpa [#allocation3], 1
    %368 = vsyncpa [#allocation6], 1
    %369 = vsyncpa [#allocation9], 1
    %370 = vsyncpa [#allocation4], 1

</llo_original>
